<compile_context>
chip_gen: v7x
topology: tpu7x:2x2x1
jax: 0.10.0
libtpu: 0.0.40
codegen_flags: <defaults>
</compile_context>

<pallas_src>
import math
import functools

import numpy as np
import jax
import jax.numpy as jnp
from jax import lax
from jax.experimental import pallas as pl
from jax.experimental.pallas import tpu as pltpu


def _round_up(a, b):
    return -(-a // b) * b


# -----------------------------------------------------------------------------
# Pallas kernel: one (expert, batch) tile per grid step.
# -----------------------------------------------------------------------------
def _mosa_expert_kernel(xg_ref, w_ref, wo_ref, cs_ref, gq_ref, ik_ref, out_ref):
    f32 = jnp.float32
    bf16 = jnp.bfloat16

    xg = xg_ref[0, 0]            # (k, h)       bf16 gathered tokens
    cosf = cs_ref[0, 0]          # (k, h_prim)  f32 cos (1 past n_rotate)
    sinf = cs_ref[0, 1]          # (k, h_prim)  f32 sin (0 past n_rotate)
    gate = gq_ref[0, 0]          # (k, 1)       f32 router gate (0 on pad rows)
    idx_q = gq_ref[0, 1]         # (k, 1)       f32 original-seq index (query side)
    idx_k = ik_ref[0, 0]         # (1, k)       f32 original-seq index (key side)

    wq = w_ref[0, 0]             # (h, h_prim)  bf16, 1/sqrt(h_prim) folded in
    wqr = w_ref[0, 1]            # (h, h_prim)  bf16, = Wq @ R * scale
    wk = w_ref[0, 2]
    wkr = w_ref[0, 3]
    wv = w_ref[0, 4]
    wo = wo_ref[0]               # (h_prim, h)  bf16

    # --- Expert projections: bf16 operands, f32 accumulation on the MXU ---
    q = jnp.dot(xg, wq, preferred_element_type=f32)
    qr = jnp.dot(xg, wqr, preferred_element_type=f32)
    kk = jnp.dot(xg, wk, preferred_element_type=f32)
    kr = jnp.dot(xg, wkr, preferred_element_type=f32)
    v = jnp.dot(xg, wv, preferred_element_type=f32)

    # --- RoPE: rotate_half folded into WqR/WkR; pure f32 VPU combine ---
    q = q * cosf + qr * sinf
    kk = kk * cosf + kr * sinf

    # --- Causal-in-original-sequence mask computed in-kernel (no bias DMA) ---
    mask = idx_q >= idx_k                                        # (k, k)

    scores = jnp.einsum('qd,kd->qk', q.astype(bf16), kk.astype(bf16),
                        preferred_element_type=f32)              # scale pre-folded
    scores = jnp.where(mask, scores, -1e30)

    m = jnp.max(scores, axis=-1, keepdims=True)
    p = jnp.exp(scores - m)
    denom = jnp.sum(p, axis=-1, keepdims=True)
    # softmax normalization fused with the router gate; reciprocal on the EUP.
    inv = gate * pl.reciprocal(denom, approx=True)

    av = jnp.einsum('qk,kd->qd', p.astype(bf16), v.astype(bf16),
                    preferred_element_type=f32) * inv

    out_ref[0, 0] = jnp.dot(av.astype(bf16), wo,
                            preferred_element_type=f32).astype(out_ref.dtype)


# -----------------------------------------------------------------------------
# Host-side prep: router, top-k, gather, RoPE tables, weight packing.
# -----------------------------------------------------------------------------
def _prep(X, Wr, Wqkv, *, sparsity, h_prim, n_rotate, rope_base):
    B, T, h = X.shape
    E = Wr.shape[1]
    f32 = jnp.float32
    bf16 = jnp.bfloat16

    logits = jax.nn.sigmoid(X @ Wr)                              # (B, T, E)
    k = T // sparsity
    k = min(max(k, 2), T)
    vals, idx = lax.top_k(jnp.transpose(logits, (0, 2, 1)), k)   # (B, E, k)

    # Pad k up to a multiple of 8 so kernel tiles never split a sublane group.
    # Pad rows: index = T (always masked as keys; one-hot column = 0), gate = 0.
    k_pad = _round_up(k, 8)
    if k_pad > k:
        pad = k_pad - k
        idx = jnp.concatenate(
            [idx, jnp.full((B, E, pad), T, idx.dtype)], axis=-1)
        vals = jnp.concatenate(
            [vals, jnp.zeros((B, E, pad), vals.dtype)], axis=-1)

    # Gather selected tokens (clamp pad indices; their output is zeroed anyway).
    gather_idx = jnp.minimum(idx, T - 1)
    Xg = jnp.take_along_axis(X[:, None, :, :], gather_idx[..., None], axis=2)
    Xg_e = jnp.transpose(Xg, (1, 0, 2, 3)).astype(bf16)          # (E, B, kp, h)

    # TODO(synk): MoSARotaryPosEncoding source not provided; standard rotate_half
    # RoPE with positions = original token indices is assumed.
    half = n_rotate // 2
    posf = idx.astype(f32)                                       # (B, E, kp)
    inv_freq = 1.0 / (rope_base ** (jnp.arange(half, dtype=f32) * 2.0 / n_rotate))
    ang = posf[..., None] * inv_freq                             # (B, E, kp, half)
    cos2 = jnp.concatenate([jnp.cos(ang), jnp.cos(ang)], axis=-1)
    sin2 = jnp.concatenate([jnp.sin(ang), jnp.sin(ang)], axis=-1)
    padw = h_prim - n_rotate
    cosF = jnp.concatenate([cos2, jnp.ones(posf.shape + (padw,), f32)], axis=-1)
    sinF = jnp.concatenate([sin2, jnp.zeros(posf.shape + (padw,), f32)], axis=-1)

    # cos/sin packed on a leading axis (no lane-offset slicing in-kernel).
    cs = jnp.stack([cosF, sinF], axis=2)                         # (B, E, 2, kp, hp)
    cs_e = jnp.transpose(cs, (1, 0, 2, 3, 4)).reshape(E, 2 * B, k_pad, h_prim)

    # router gate + query-side index packed on a leading axis.
    gq = jnp.stack([vals, posf], axis=2)[..., None]              # (B, E, 2, kp, 1)
    gq_e = jnp.transpose(gq, (1, 0, 2, 3, 4)).reshape(E, 2 * B, k_pad, 1)

    # key-side index row (for the in-kernel broadcast compare).
    ik_e = jnp.transpose(posf[:, :, None, :], (1, 0, 2, 3))      # (E, B, 1, kp)

    # rotate_half as a signed permutation folded into extra Q/K weights;
    # 1/sqrt(h_prim) attention scale folded into the Q-side weights.
    R = np.zeros((h_prim, h_prim), dtype=np.float32)
    for j in range(half):
        R[j + half, j] = -1.0        # column j reads -x[j+half]
    for j in range(half, n_rotate):
        R[j - half, j] = 1.0         # column j reads +x[j-half]
    R = jnp.asarray(R)

    scale = 1.0 / math.sqrt(h_prim)
    Wq = Wqkv[:, :, :h_prim]
    Wk = Wqkv[:, :, h_prim:2 * h_prim]
    Wv = Wqkv[:, :, 2 * h_prim:]
    W_pack = jnp.stack(
        [Wq * scale, (Wq @ R) * scale, Wk, Wk @ R, Wv], axis=1).astype(bf16)
    # (E, 5, h, h_prim): single weight DMA per grid step, leading-axis indexed.

    return Xg_e, idx, k, k_pad, cs_e, gq_e, ik_e, W_pack


def pure_mosa_forward(X, Wr, Wqkv, Wo, *, sparsity, h_prim, n_rotate,
                      rope_base=10000.0):
    assert n_rotate > 0, "demo assumes rotate_fraction > 0"
    B, T, h = X.shape
    E = Wr.shape[1]
    (Xg_e, idx, k, k_pad, cs_e, gq_e, ik_e,
     W_pack) = _prep(X, Wr, Wqkv, sparsity=sparsity, h_prim=h_prim,
                     n_rotate=n_rotate, rope_base=rope_base)
    Wo_bf = Wo.astype(jnp.bfloat16)

    # Scoped VMEM limit from the (lane/sublane padded, double-buffered) footprint.
    def _blk(shape, itemsize):
        s = list(shape)
        s[-1] = _round_up(s[-1], 128)
        if len(s) >= 2:
            s[-2] = _round_up(s[-2], 8)
        n = 1
        for d in s:
            n *= d
        return n * itemsize

    step_bytes = (_blk((k_pad, h), 2) + _blk((5, h, h_prim), 2)
                  + _blk((h_prim, h), 2) + _blk((2, k_pad, h_prim), 4)
                  + _blk((2, k_pad, 1), 4) + _blk((1, k_pad), 4)
                  + _blk((k_pad, h), 4))
    vmem_limit = int(min(60 * 1024 * 1024,
                         max(32 * 1024 * 1024, 4 * step_bytes)))

    out_e = pl.pallas_call(
        _mosa_expert_kernel,
        out_shape=jax.ShapeDtypeStruct((E, B, k_pad, h), jnp.float32),
        grid=(E, B),
        in_specs=[
            pl.BlockSpec((1, 1, k_pad, h), lambda e, b: (e, b, 0, 0)),        # Xg
            pl.BlockSpec((1, 5, h, h_prim), lambda e, b: (e, 0, 0, 0)),       # W pack (resident over b)
            pl.BlockSpec((1, h_prim, h), lambda e, b: (e, 0, 0)),             # Wo    (resident over b)
            pl.BlockSpec((1, 2, k_pad, h_prim), lambda e, b: (e, b, 0, 0)),   # cos / sin
            pl.BlockSpec((1, 2, k_pad, 1), lambda e, b: (e, b, 0, 0)),        # gate / idx_q
            pl.BlockSpec((1, 1, 1, k_pad), lambda e, b: (e, b, 0, 0)),        # idx_k row
        ],
        out_specs=pl.BlockSpec((1, 1, k_pad, h), lambda e, b: (e, b, 0, 0)),
        compiler_params=pltpu.CompilerParams(
            dimension_semantics=("parallel", "parallel"),
            vmem_limit_bytes=vmem_limit),
    )(Xg_e, W_pack, Wo_bf, cs_e, gq_e, ik_e)

    # Scatter-add back into the full sequence via a bf16 one-hot matmul (MXU);
    # pad rows carry index == T, so their one-hot row is all-zero.
    out_pre = jnp.transpose(out_e, (1, 0, 2, 3)).reshape(B, E * k_pad, h)
    flat_idx = idx.reshape(B, E * k_pad)
    onehot = (flat_idx[:, :, None]
              == jnp.arange(T, dtype=flat_idx.dtype)[None, None, :])
    out = jnp.einsum('bmt,bmi->bti', onehot.astype(jnp.bfloat16),
                     out_pre.astype(jnp.bfloat16),
                     preferred_element_type=jnp.float32)
    return out.astype(X.dtype)


# -----------------------------------------------------------------------------
# Pure-JAX reference (mirrors the PyTorch forward) for a correctness check
# -----------------------------------------------------------------------------
def pure_mosa_reference(X, Wr, Wqkv, Wo, *, sparsity, h_prim, n_rotate,
                        rope_base=10000.0):
    B, T, h = X.shape
    E = Wr.shape[1]
    logits = jax.nn.sigmoid(X @ Wr)
    k = min(max(T // sparsity, 2), T)
    vals, idx = lax.top_k(jnp.transpose(logits, (0, 2, 1)), k)
    Xg = jnp.take_along_axis(X[:, None, :, :], idx[..., None], axis=2)

    qkv = jnp.einsum('beki,eij->bekj', Xg, Wqkv)
    q, k_, v = qkv[..., :h_prim], qkv[..., h_prim:2 * h_prim], qkv[..., 2 * h_prim:]

    half = n_rotate // 2
    posf = idx.astype(jnp.float32)
    inv_freq = 1.0 / (rope_base ** (jnp.arange(half, dtype=jnp.float32)
                                    * 2.0 / n_rotate))
    ang = posf[..., None] * inv_freq
    cos = jnp.concatenate([jnp.cos(ang), jnp.cos(ang)], axis=-1)
    sin = jnp.concatenate([jnp.sin(ang), jnp.sin(ang)], axis=-1)

    def rope(x):
        xr = x[..., :n_rotate]
        rot = jnp.concatenate([-xr[..., half:], xr[..., :half]], axis=-1)
        xr = xr * cos + rot * sin
        return jnp.concatenate([xr, x[..., n_rotate:]], axis=-1)

    q, k_ = rope(q), rope(k_)

    mask = idx[:, :, :, None] >= idx[:, :, None, :]
    scores = jnp.einsum('beqd,bekd->beqk', q, k_) / math.sqrt(h_prim)
    scores = jnp.where(mask, scores, -1e30)
    p = jax.nn.softmax(scores, axis=-1)
    av = jnp.einsum('beqk,bekd->beqd', p, v) * vals[..., None]
    out_pre = jnp.einsum('bekj,eji->beki', av, Wo)

    flat_idx = idx.reshape(B, E * k)
    flat_src = out_pre.reshape(B, E * k, h)
    return jax.vmap(
        lambda i, s: jnp.zeros((T, h), X.dtype).at[i].add(s))(flat_idx, flat_src)


# -----------------------------------------------------------------------------
if __name__ == "__main__":
    B, T, h, h_prim, E, sparsity = 2, 64, 32, 16, 4, 8
    rotate_fraction, rope_base = 0.5, 10000.0
    n_rotate = int(rotate_fraction * h_prim)
    n_rotate -= n_rotate % 2

    key = jax.random.PRNGKey(0)
    kx, kr, kq, ko = jax.random.split(key, 4)

    X = jax.random.normal(kx, (B, T, h), dtype=jnp.float32)
    # router Linear(h -> E, no bias); stored transposed so logits = X @ Wr
    Wr = jax.random.uniform(kr, (h, E), jnp.float32,
                            -1.0 / math.sqrt(h), 1.0 / math.sqrt(h))
    # ExpertGather W: (E, h, 3*h_prim), uniform(+-1/sqrt(3*h_prim))
    Wqkv = jax.random.uniform(kq, (E, h, 3 * h_prim), jnp.float32,
                              -1.0 / math.sqrt(3 * h_prim),
                              1.0 / math.sqrt(3 * h_prim))
    # ExpertScatter W: (E, h_prim, h), uniform(+-1/sqrt(h*E))
    Wo = jax.random.uniform(ko, (E, h_prim, h), jnp.float32,
                            -1.0 / math.sqrt(h * E), 1.0 / math.sqrt(h * E))

    fwd = jax.jit(functools.partial(pure_mosa_forward, sparsity=sparsity,
                                    h_prim=h_prim, n_rotate=n_rotate,
                                    rope_base=rope_base))
    out = jax.block_until_ready(fwd(X, Wr, Wqkv, Wo))
    assert out.shape == (B, T, h)

    ref = jax.block_until_ready(
        pure_mosa_reference(X, Wr, Wqkv, Wo, sparsity=sparsity,
                            h_prim=h_prim, n_rotate=n_rotate,
                            rope_base=rope_base))
    # tolerance covers bf16 MXU operands + the EUP approximate reciprocal
    np.testing.assert_allclose(np.asarray(out), np.asarray(ref),
                               rtol=2e-2, atol=1e-2)

    print("KERNEL_OK")
</pallas_src>

<mosaic_0001>
module attributes {stable_mosaic.version = 11 : i64} {
  func.func @_mosa_expert_kernel(%arg0: i32, %arg1: i32, %arg2: memref<1x1x8x32xbf16, #tpu.memory_space<vmem>>, %arg3: memref<1x5x32x16xbf16, #tpu.memory_space<vmem>>, %arg4: memref<1x16x32xbf16, #tpu.memory_space<vmem>>, %arg5: memref<1x2x8x16xf32, #tpu.memory_space<vmem>>, %arg6: memref<1x2x8x1xf32, #tpu.memory_space<vmem>>, %arg7: memref<1x1x1x8xf32, #tpu.memory_space<vmem>>, %arg8: memref<1x1x8x32xf32, #tpu.memory_space<vmem>>) attributes {dimension_semantics = [#tpu.dimension_semantics<parallel>, #tpu.dimension_semantics<parallel>], iteration_bounds = array<i64: 4, 2>, scalar_prefetch = 0 : i64, scratch_operands = 0 : i64, tpu.core_type = #tpu.core_type<tc>, window_params = [{transform_indices = @transform_0, window_bounds = array<i64: 1, 1, 8, 32>}, {transform_indices = @transform_1, window_bounds = array<i64: 1, 5, 32, 16>}, {transform_indices = @transform_2, window_bounds = array<i64: 1, 16, 32>}, {transform_indices = @transform_3, window_bounds = array<i64: 1, 2, 8, 16>}, {transform_indices = @transform_4, window_bounds = array<i64: 1, 2, 8, 1>}, {transform_indices = @transform_5, window_bounds = array<i64: 1, 1, 1, 8>}, {transform_indices = @transform_6, window_bounds = array<i64: 1, 1, 8, 32>}]} {
    %c0 = arith.constant 0 : index
    %c0_0 = arith.constant 0 : index
    %c0_1 = arith.constant 0 : index
    %c0_2 = arith.constant 0 : index
    %0 = vector.load %arg2[%c0, %c0_0, %c0_1, %c0_2] : memref<1x1x8x32xbf16, #tpu.memory_space<vmem>>, vector<1x1x8x32xbf16>
    %1 = vector.shape_cast %0 : vector<1x1x8x32xbf16> to vector<8x32xbf16>
    %c0_3 = arith.constant 0 : index
    %c0_4 = arith.constant 0 : index
    %c0_5 = arith.constant 0 : index
    %c0_6 = arith.constant 0 : index
    %2 = vector.load %arg5[%c0_3, %c0_4, %c0_5, %c0_6] : memref<1x2x8x16xf32, #tpu.memory_space<vmem>>, vector<1x1x8x16xf32>
    %3 = vector.shape_cast %2 : vector<1x1x8x16xf32> to vector<8x16xf32>
    %c0_7 = arith.constant 0 : index
    %c1 = arith.constant 1 : index
    %c0_8 = arith.constant 0 : index
    %c0_9 = arith.constant 0 : index
    %4 = vector.load %arg5[%c0_7, %c1, %c0_8, %c0_9] : memref<1x2x8x16xf32, #tpu.memory_space<vmem>>, vector<1x1x8x16xf32>
    %5 = vector.shape_cast %4 : vector<1x1x8x16xf32> to vector<8x16xf32>
    %c0_10 = arith.constant 0 : index
    %c0_11 = arith.constant 0 : index
    %c0_12 = arith.constant 0 : index
    %c0_13 = arith.constant 0 : index
    %6 = vector.load %arg6[%c0_10, %c0_11, %c0_12, %c0_13] : memref<1x2x8x1xf32, #tpu.memory_space<vmem>>, vector<1x1x8x1xf32>
    %7 = vector.shape_cast %6 : vector<1x1x8x1xf32> to vector<8x1xf32>
    %c0_14 = arith.constant 0 : index
    %c1_15 = arith.constant 1 : index
    %c0_16 = arith.constant 0 : index
    %c0_17 = arith.constant 0 : index
    %8 = vector.load %arg6[%c0_14, %c1_15, %c0_16, %c0_17] : memref<1x2x8x1xf32, #tpu.memory_space<vmem>>, vector<1x1x8x1xf32>
    %9 = vector.shape_cast %8 : vector<1x1x8x1xf32> to vector<8x1xf32>
    %c0_18 = arith.constant 0 : index
    %c0_19 = arith.constant 0 : index
    %c0_20 = arith.constant 0 : index
    %c0_21 = arith.constant 0 : index
    %10 = vector.load %arg7[%c0_18, %c0_19, %c0_20, %c0_21] : memref<1x1x1x8xf32, #tpu.memory_space<vmem>>, vector<1x1x1x8xf32>
    %11 = vector.shape_cast %10 : vector<1x1x1x8xf32> to vector<1x8xf32>
    %c0_22 = arith.constant 0 : index
    %c0_23 = arith.constant 0 : index
    %c0_24 = arith.constant 0 : index
    %c0_25 = arith.constant 0 : index
    %12 = vector.load %arg3[%c0_22, %c0_23, %c0_24, %c0_25] : memref<1x5x32x16xbf16, #tpu.memory_space<vmem>>, vector<1x1x32x16xbf16>
    %13 = vector.shape_cast %12 : vector<1x1x32x16xbf16> to vector<32x16xbf16>
    %c0_26 = arith.constant 0 : index
    %c1_27 = arith.constant 1 : index
    %c0_28 = arith.constant 0 : index
    %c0_29 = arith.constant 0 : index
    %14 = vector.load %arg3[%c0_26, %c1_27, %c0_28, %c0_29] : memref<1x5x32x16xbf16, #tpu.memory_space<vmem>>, vector<1x1x32x16xbf16>
    %15 = vector.shape_cast %14 : vector<1x1x32x16xbf16> to vector<32x16xbf16>
    %c0_30 = arith.constant 0 : index
    %c2 = arith.constant 2 : index
    %c0_31 = arith.constant 0 : index
    %c0_32 = arith.constant 0 : index
    %16 = vector.load %arg3[%c0_30, %c2, %c0_31, %c0_32] : memref<1x5x32x16xbf16, #tpu.memory_space<vmem>>, vector<1x1x32x16xbf16>
    %17 = vector.shape_cast %16 : vector<1x1x32x16xbf16> to vector<32x16xbf16>
    %c0_33 = arith.constant 0 : index
    %c3 = arith.constant 3 : index
    %c0_34 = arith.constant 0 : index
    %c0_35 = arith.constant 0 : index
    %18 = vector.load %arg3[%c0_33, %c3, %c0_34, %c0_35] : memref<1x5x32x16xbf16, #tpu.memory_space<vmem>>, vector<1x1x32x16xbf16>
    %19 = vector.shape_cast %18 : vector<1x1x32x16xbf16> to vector<32x16xbf16>
    %c0_36 = arith.constant 0 : index
    %c4 = arith.constant 4 : index
    %c0_37 = arith.constant 0 : index
    %c0_38 = arith.constant 0 : index
    %20 = vector.load %arg3[%c0_36, %c4, %c0_37, %c0_38] : memref<1x5x32x16xbf16, #tpu.memory_space<vmem>>, vector<1x1x32x16xbf16>
    %21 = vector.shape_cast %20 : vector<1x1x32x16xbf16> to vector<32x16xbf16>
    %c0_39 = arith.constant 0 : index
    %c0_40 = arith.constant 0 : index
    %c0_41 = arith.constant 0 : index
    %22 = vector.load %arg4[%c0_39, %c0_40, %c0_41] : memref<1x16x32xbf16, #tpu.memory_space<vmem>>, vector<1x16x32xbf16>
    %23 = vector.shape_cast %22 : vector<1x16x32xbf16> to vector<16x32xbf16>
    %cst = arith.constant dense<0.000000e+00> : vector<8x16xf32>
    %24 = tpu.matmul %1, %13, %cst {dimension_numbers = #tpu.dot_dimension_numbers<[1], [0], [0], [1], [0, 0, 1, 1], [], []>} : vector<8x32xbf16>, vector<32x16xbf16>, vector<8x16xf32> -> vector<8x16xf32>
    %cst_42 = arith.constant dense<0.000000e+00> : vector<8x16xf32>
    %25 = tpu.matmul %1, %15, %cst_42 {dimension_numbers = #tpu.dot_dimension_numbers<[1], [0], [0], [1], [0, 0, 1, 1], [], []>} : vector<8x32xbf16>, vector<32x16xbf16>, vector<8x16xf32> -> vector<8x16xf32>
    %cst_43 = arith.constant dense<0.000000e+00> : vector<8x16xf32>
    %26 = tpu.matmul %1, %17, %cst_43 {dimension_numbers = #tpu.dot_dimension_numbers<[1], [0], [0], [1], [0, 0, 1, 1], [], []>} : vector<8x32xbf16>, vector<32x16xbf16>, vector<8x16xf32> -> vector<8x16xf32>
    %cst_44 = arith.constant dense<0.000000e+00> : vector<8x16xf32>
    %27 = tpu.matmul %1, %19, %cst_44 {dimension_numbers = #tpu.dot_dimension_numbers<[1], [0], [0], [1], [0, 0, 1, 1], [], []>} : vector<8x32xbf16>, vector<32x16xbf16>, vector<8x16xf32> -> vector<8x16xf32>
    %cst_45 = arith.constant dense<0.000000e+00> : vector<8x16xf32>
    %28 = tpu.matmul %1, %21, %cst_45 {dimension_numbers = #tpu.dot_dimension_numbers<[1], [0], [0], [1], [0, 0, 1, 1], [], []>} : vector<8x32xbf16>, vector<32x16xbf16>, vector<8x16xf32> -> vector<8x16xf32>
    %29 = arith.mulf %24, %3 : vector<8x16xf32>
    %30 = arith.mulf %25, %5 : vector<8x16xf32>
    %31 = arith.addf %29, %30 : vector<8x16xf32>
    %32 = arith.mulf %26, %3 : vector<8x16xf32>
    %33 = arith.mulf %27, %5 : vector<8x16xf32>
    %34 = arith.addf %32, %33 : vector<8x16xf32>
    %35 = vector.broadcast %9 : vector<8x1xf32> to vector<8x8xf32>
    %36 = vector.broadcast %11 : vector<1x8xf32> to vector<8x8xf32>
    %37 = arith.cmpf oge, %35, %36 : vector<8x8xf32>
    %38 = arith.truncf %31 : vector<8x16xf32> to vector<8x16xbf16>
    %39 = arith.truncf %34 : vector<8x16xf32> to vector<8x16xbf16>
    "tpu.trace_start"() <{level = 10 : i32, message = "qd,kd->qk"}> : () -> ()
    %cst_46 = arith.constant dense<0.000000e+00> : vector<8x8xf32>
    %40 = tpu.matmul %38, %39, %cst_46 {dimension_numbers = #tpu.dot_dimension_numbers<[1], [1], [0], [0], [0, 0, 1, 0], [], []>} : vector<8x16xbf16>, vector<8x16xbf16>, vector<8x8xf32> -> vector<8x8xf32>
    %cst_47 = arith.constant -1.000000e+30 : f32
    "tpu.trace_stop"() : () -> ()
    %41 = vector.broadcast %cst_47 : f32 to vector<8x8xf32>
    %42 = arith.select %37, %40, %41 : vector<8x8xi1>, vector<8x8xf32>
    %cst_48 = arith.constant dense<0xFF800000> : vector<8xf32>
    %43 = vector.multi_reduction <maximumf>, %42, %cst_48 [1] : vector<8x8xf32> to vector<8xf32>
    %44 = vector.shape_cast %43 : vector<8xf32> to vector<8x1xf32>
    %45 = vector.broadcast %44 : vector<8x1xf32> to vector<8x8xf32>
    %46 = arith.subf %42, %45 : vector<8x8xf32>
    %47 = math.exp %46 : vector<8x8xf32>
    %cst_49 = arith.constant dense<0.000000e+00> : vector<8xf32>
    %48 = vector.multi_reduction <add>, %47, %cst_49 [1] : vector<8x8xf32> to vector<8xf32>
    %49 = vector.shape_cast %48 : vector<8xf32> to vector<8x1xf32>
    %50 = tpu.reciprocal %49 {approx = true} : vector<8x1xf32> -> vector<8x1xf32>
    %51 = arith.mulf %7, %50 : vector<8x1xf32>
    %52 = arith.truncf %47 : vector<8x8xf32> to vector<8x8xbf16>
    %53 = arith.truncf %28 : vector<8x16xf32> to vector<8x16xbf16>
    "tpu.trace_start"() <{level = 10 : i32, message = "qk,kd->qd"}> : () -> ()
    %cst_50 = arith.constant dense<0.000000e+00> : vector<8x16xf32>
    %54 = tpu.matmul %52, %53, %cst_50 {dimension_numbers = #tpu.dot_dimension_numbers<[1], [0], [0], [1], [0, 0, 1, 1], [], []>} : vector<8x8xbf16>, vector<8x16xbf16>, vector<8x16xf32> -> vector<8x16xf32>
    "tpu.trace_stop"() : () -> ()
    %55 = vector.broadcast %51 : vector<8x1xf32> to vector<8x16xf32>
    %56 = arith.mulf %54, %55 : vector<8x16xf32>
    %57 = arith.truncf %56 : vector<8x16xf32> to vector<8x16xbf16>
    %cst_51 = arith.constant dense<0.000000e+00> : vector<8x32xf32>
    %58 = tpu.matmul %57, %23, %cst_51 {dimension_numbers = #tpu.dot_dimension_numbers<[1], [0], [0], [1], [0, 0, 1, 1], [], []>} : vector<8x16xbf16>, vector<16x32xbf16>, vector<8x32xf32> -> vector<8x32xf32>
    %c0_52 = arith.constant 0 : index
    %c0_53 = arith.constant 0 : index
    %c0_54 = arith.constant 0 : index
    %c0_55 = arith.constant 0 : index
    %59 = vector.load %arg8[%c0_52, %c0_53, %c0_54, %c0_55] : memref<1x1x8x32xf32, #tpu.memory_space<vmem>>, vector<1x1x8x32xf32>
    %60 = vector.shape_cast %59 : vector<1x1x8x32xf32> to vector<8x32xf32>
    %61 = vector.shape_cast %58 : vector<8x32xf32> to vector<1x1x8x32xf32>
    tpu.vector_store %arg8[%c0_52, %c0_53, %c0_54, %c0_55], %61 {strides = array<i32>} : memref<1x1x8x32xf32, #tpu.memory_space<vmem>>, vector<1x1x8x32xf32>,
    return
  }
  func.func @transform_0(%arg0: i32, %arg1: i32) -> (i32, i32, i32, i32) {
    %c0_i32 = arith.constant 0 : i32
    %c0_i32_0 = arith.constant 0 : i32
    %c0_i32_1 = arith.constant 0 : i32
    return %arg0, %arg1, %c0_i32, %c0_i32_0 : i32, i32, i32, i32
  }
  func.func @transform_1(%arg0: i32, %arg1: i32) -> (i32, i32, i32, i32) {
    %c0_i32 = arith.constant 0 : i32
    %c0_i32_0 = arith.constant 0 : i32
    %c0_i32_1 = arith.constant 0 : i32
    %c0_i32_2 = arith.constant 0 : i32
    return %arg0, %c0_i32, %c0_i32_0, %c0_i32_1 : i32, i32, i32, i32
  }
  func.func @transform_2(%arg0: i32, %arg1: i32) -> (i32, i32, i32) {
    %c0_i32 = arith.constant 0 : i32
    %c0_i32_0 = arith.constant 0 : i32
    %c0_i32_1 = arith.constant 0 : i32
    return %arg0, %c0_i32, %c0_i32_0 : i32, i32, i32
  }
  func.func @transform_3(%arg0: i32, %arg1: i32) -> (i32, i32, i32, i32) {
    %c0_i32 = arith.constant 0 : i32
    %c0_i32_0 = arith.constant 0 : i32
    %c0_i32_1 = arith.constant 0 : i32
    return %arg0, %arg1, %c0_i32, %c0_i32_0 : i32, i32, i32, i32
  }
  func.func @transform_4(%arg0: i32, %arg1: i32) -> (i32, i32, i32, i32) {
    %c0_i32 = arith.constant 0 : i32
    %c0_i32_0 = arith.constant 0 : i32
    %c0_i32_1 = arith.constant 0 : i32
    return %arg0, %arg1, %c0_i32, %c0_i32_0 : i32, i32, i32, i32
  }
  func.func @transform_5(%arg0: i32, %arg1: i32) -> (i32, i32, i32, i32) {
    %c0_i32 = arith.constant 0 : i32
    %c0_i32_0 = arith.constant 0 : i32
    %c0_i32_1 = arith.constant 0 : i32
    return %arg0, %arg1, %c0_i32, %c0_i32_0 : i32, i32, i32, i32
  }
  func.func @transform_6(%arg0: i32, %arg1: i32) -> (i32, i32, i32, i32) {
    %c0_i32 = arith.constant 0 : i32
    %c0_i32_0 = arith.constant 0 : i32
    %c0_i32_1 = arith.constant 0 : i32
    return %arg0, %arg1, %c0_i32, %c0_i32_0 : i32, i32, i32, i32
  }
}

</mosaic_0001>

<llo_original>
// kernel: eq.8
$region0: #{eq.8}
  %s0 = inlined_call_operand.vmem [shape: s32[2,4,8], index: 0, kind: input, shape index: {}]
  %s1 = inlined_call_operand.vmem [shape: s32[2,32], index: 1, kind: output, shape index: {}]
  $region1: #{eq.8} parent=0
    #allocation0 [shape = 'u8[4096]{0}', space=vmem, size = 0x1000, scoped, tag = 'scoped mem for output reshape']
    #allocation1 [shape = 'u8[8192]{0}', space=vmem, size = 0x2000, scoped, tag = 'scoped mem for input reshape']
    %s3 = sshllo.u32 0, 4
    %s4 = scalar_lea.vmem %s0, 4
    %v5 = vld [vmem:[%s4] sm:%s3]
    %s6 = scalar_lea.vmem [#allocation1], 8
    %7 = vst [vmem:[%s6] sm:%s3] %v5
    %v8 = vld [vmem:[%s0] sm:%s3]
    %9 = vst [vmem:[#allocation1] sm:%s3] %v8
    %s10 = smov 3
    %v11 = vld [vmem:[#allocation1] ss:$8 sm:%s10]
    %vm12 = vcmask 64512
    %13 = vst.msk [vmem:[#allocation0] sm:$0x3] %vm12, %v11
    %s14 = scalar_lea.vmem [#allocation1], 3
    %s15 = smov 3
    %v16 = vld [vmem:[%s14] ss:$8 sm:%s15]
    %17 = vrot.lane.b32.xlu0 %v16, 24
    %v18 = vpop.permute.xlu0 %17
    %vm19 = vcmask 261312
    %20 = vst.msk [vmem:[#allocation0] sm:$0x3] %vm19, %v18
    %s21 = scalar_lea.vmem [#allocation1], 2
    %s22 = smov 3
    %v23 = vld [vmem:[%s21] ss:$8 sm:%s22]
    %24 = vrot.lane.b32.xlu0 %v23, 16
    %v25 = vpop.permute.xlu0 %24
    %vm26 = vcmask 195712
    %27 = vst.msk [vmem:[#allocation0] sm:$0x3] %vm26, %v25
    %s28 = scalar_lea.vmem [#allocation1], 1
    %s29 = smov 3
    %v30 = vld [vmem:[%s28] ss:$8 sm:%s29]
    %31 = vrot.lane.b32.xlu0 %v30, 8
    %v32 = vpop.permute.xlu0 %31
    %vm33 = vcmask 130112
    %34 = vst.msk [vmem:[#allocation0] sm:$0x3] %vm33, %v32
    %s36 = sshllo.u32 0, 2
    %v38 = vld [vmem:[#allocation0] sm:%s36]
    %s39 = sshllo.u32 0, 2
    %40 = vst [vmem:[%s1] sm:%s39] %v38

// kernel: pure_mosa_forward.1
$region0: #{pure_mosa_forward.1}
  #allocation0 [shape = 'u32[]', space=smem, size = 0x4, offset = 0x4, fixed_abs, tag = 'smem constant byte address 0x4 - core index']
  #allocation1 [shape = 'u32[144,128]{1,0:T(1,128)}', space=vmem, size = 0x12000, scoped, tag = 'internal scratch']
  %s0 = inlined_call_operand.vmem [shape: bf16[4,2,8,32], index: 0, kind: input, shape index: {}]
  %s1 = inlined_call_operand.vmem [shape: bf16[4,5,32,16], index: 1, kind: input, shape index: {}]
  %s2 = inlined_call_operand.vmem [shape: bf16[4,16,32], index: 2, kind: input, shape index: {}]
  %s3 = inlined_call_operand.vmem [shape: f32[4,4,8,16], index: 3, kind: input, shape index: {}]
  %s4 = inlined_call_operand.vmem [shape: f32[4,4,8,1], index: 4, kind: input, shape index: {}]
  %s5 = inlined_call_operand.vmem [shape: f32[4,2,1,8], index: 5, kind: input, shape index: {}]
  %s6 = inlined_call_operand.vmem [shape: f32[4,2,8,32], index: 6, kind: output, shape index: {}]
  %s7 = sld [smem:[#allocation0]]
  $region57: #{pure_mosa_forward.1} parent=0
    _
  %s9 = ssub.s32 1, %s7
  %s10 = scalar_select 0, %s9, %s7
  loop: start=0, step=1, limit=10
  $region2: #{pure_mosa_forward.1} parent=0 // loop_pre_header
    _
  $region3: #{pure_mosa_forward.1} parent=0 // loop_header
    %s12 = sphi 0, %s16
    %p13 = scmp.ge.s32.totalorder %s12, 10
    %s19 = sphi 0, %s31
    %s20 = sphi 0, %s27
    %s21 = sphi 0, %s19
    %s22 = sphi 0, %s20
    %s23 = sphi 0, %s21
    %s24 = sphi 0, %s22
    %s36 = sphi 0, %s38
    %s39 = sphi 0, %s36
    %s40 = sphi 0, %s39
    %s56 = sphi 0, %s40
    %s62 = sphi 0, %s64
    %s65 = sphi 0, %s62
    %s66 = sphi 0, %s65
    %s82 = sphi 0, %s66
    %s88 = sphi 0, %s90
    %s91 = sphi 0, %s88
    %s92 = sphi 0, %s91
    %s108 = sphi 0, %s92
    %s116 = sphi 0, %s118
    %s119 = sphi 0, %s116
    %s120 = sphi 0, %s119
    %s136 = sphi 0, %s120
    %s144 = sphi 0, %s146
    %s147 = sphi 0, %s144
    %s148 = sphi 0, %s147
    %s164 = sphi 0, %s148
    %s172 = sphi 0, %s174
    %s175 = sphi 0, %s172
    %s176 = sphi 0, %s175
    %s192 = sphi 0, %s176
    %s200 = sphi 0, %s202
    %s203 = sphi 0, %s200
    %s204 = sphi 0, %s203
    %s220 = sphi 0, %s204
  $region4: #{pure_mosa_forward.1} parent=0 // loop_header_branch
    %15 = sbr.rel (%p13) target = $region8
  $region5: #{pure_mosa_forward.1} parent=0 // loop_body
    %s17 = ssub.s32 %s12, 1
    %s18 = ssub.s32 %s12, 2
    %s25 = sadd.s32 1, %s20
    %p26 = scmp.ge.s32.totalorder %s25, 2
    %s27 = scalar_select %p26, 0, %s25
    %s28 = sadd.s32 1, %s19
    %s29 = scalar_select %p26, %s28, %s19
    %p30 = scmp.ge.s32.totalorder %s29, 4
    %s31 = scalar_select %p30, 0, %s29
    %s32 = ssub.s32 %s19, %s31
    %s33 = ssub.s32 %s20, %s27
    %s34 = sor.u32 %s32, %s33
    %p35 = scmp.eq.s32.totalorder %s34, 0
    %s37 = sadd.s32 %s36, 1
    %s38 = scalar_select %p35, %s36, %s37
    %p41 = pneg %p35
    %p42 = scmp.eq.s32.totalorder %s12, 7
    %p43 = por %p41, %p42
    %p44 = scmp.ne.s32.totalorder %s36, %s39
    %p45 = scmp.eq.s32.totalorder %s12, 0
    %p46 = por %p44, %p45
    %p47 = scmp.ne.s32.totalorder %s36, %s39
    %p48 = scmp.eq.s32.totalorder %s17, 7
    %p49 = por %p47, %p48
    %p50 = scmp.ne.s32.totalorder %s39, %s40
    %p51 = scmp.eq.s32.totalorder %s17, 0
    %p52 = por %p50, %p51
    %p53 = scmp.ne.s32.totalorder %s39, %s40
    %p54 = scmp.eq.s32.totalorder %s18, 7
    %p55 = por %p53, %p54
    %p57 = scmp.ne.s32.totalorder %s40, %s56
    %p58 = scmp.eq.s32.totalorder %s18, 0
    %p59 = por %p57, %p58
    %s60 = ssub.s32 %s19, %s31
    %p61 = scmp.eq.s32.totalorder %s60, 0
    %s63 = sadd.s32 %s62, 1
    %s64 = scalar_select %p61, %s62, %s63
    %p67 = pneg %p61
    %p68 = scmp.eq.s32.totalorder %s12, 7
    %p69 = por %p67, %p68
    %p70 = scmp.ne.s32.totalorder %s62, %s65
    %p71 = scmp.eq.s32.totalorder %s12, 0
    %p72 = por %p70, %p71
    %p73 = scmp.ne.s32.totalorder %s62, %s65
    %p74 = scmp.eq.s32.totalorder %s17, 7
    %p75 = por %p73, %p74
    %p76 = scmp.ne.s32.totalorder %s65, %s66
    %p77 = scmp.eq.s32.totalorder %s17, 0
    %p78 = por %p76, %p77
    %p79 = scmp.ne.s32.totalorder %s65, %s66
    %p80 = scmp.eq.s32.totalorder %s18, 7
    %p81 = por %p79, %p80
    %p83 = scmp.ne.s32.totalorder %s66, %s82
    %p84 = scmp.eq.s32.totalorder %s18, 0
    %p85 = por %p83, %p84
    %s86 = ssub.s32 %s19, %s31
    %p87 = scmp.eq.s32.totalorder %s86, 0
    %s89 = sadd.s32 %s88, 1
    %s90 = scalar_select %p87, %s88, %s89
    %p93 = pneg %p87
    %p94 = scmp.eq.s32.totalorder %s12, 7
    %p95 = por %p93, %p94
    %p96 = scmp.ne.s32.totalorder %s88, %s91
    %p97 = scmp.eq.s32.totalorder %s12, 0
    %p98 = por %p96, %p97
    %p99 = scmp.ne.s32.totalorder %s88, %s91
    %p100 = scmp.eq.s32.totalorder %s17, 7
    %p101 = por %p99, %p100
    %p102 = scmp.ne.s32.totalorder %s91, %s92
    %p103 = scmp.eq.s32.totalorder %s17, 0
    %p104 = por %p102, %p103
    %p105 = scmp.ne.s32.totalorder %s91, %s92
    %p106 = scmp.eq.s32.totalorder %s18, 7
    %p107 = por %p105, %p106
    %p109 = scmp.ne.s32.totalorder %s92, %s108
    %p110 = scmp.eq.s32.totalorder %s18, 0
    %p111 = por %p109, %p110
    %s112 = ssub.s32 %s19, %s31
    %s113 = ssub.s32 %s20, %s27
    %s114 = sor.u32 %s112, %s113
    %p115 = scmp.eq.s32.totalorder %s114, 0
    %s117 = sadd.s32 %s116, 1
    %s118 = scalar_select %p115, %s116, %s117
    %p121 = pneg %p115
    %p122 = scmp.eq.s32.totalorder %s12, 7
    %p123 = por %p121, %p122
    %p124 = scmp.ne.s32.totalorder %s116, %s119
    %p125 = scmp.eq.s32.totalorder %s12, 0
    %p126 = por %p124, %p125
    %p127 = scmp.ne.s32.totalorder %s116, %s119
    %p128 = scmp.eq.s32.totalorder %s17, 7
    %p129 = por %p127, %p128
    %p130 = scmp.ne.s32.totalorder %s119, %s120
    %p131 = scmp.eq.s32.totalorder %s17, 0
    %p132 = por %p130, %p131
    %p133 = scmp.ne.s32.totalorder %s119, %s120
    %p134 = scmp.eq.s32.totalorder %s18, 7
    %p135 = por %p133, %p134
    %p137 = scmp.ne.s32.totalorder %s120, %s136
    %p138 = scmp.eq.s32.totalorder %s18, 0
    %p139 = por %p137, %p138
    %s140 = ssub.s32 %s19, %s31
    %s141 = ssub.s32 %s20, %s27
    %s142 = sor.u32 %s140, %s141
    %p143 = scmp.eq.s32.totalorder %s142, 0
    %s145 = sadd.s32 %s144, 1
    %s146 = scalar_select %p143, %s144, %s145
    %p149 = pneg %p143
    %p150 = scmp.eq.s32.totalorder %s12, 7
    %p151 = por %p149, %p150
    %p152 = scmp.ne.s32.totalorder %s144, %s147
    %p153 = scmp.eq.s32.totalorder %s12, 0
    %p154 = por %p152, %p153
    %p155 = scmp.ne.s32.totalorder %s144, %s147
    %p156 = scmp.eq.s32.totalorder %s17, 7
    %p157 = por %p155, %p156
    %p158 = scmp.ne.s32.totalorder %s147, %s148
    %p159 = scmp.eq.s32.totalorder %s17, 0
    %p160 = por %p158, %p159
    %p161 = scmp.ne.s32.totalorder %s147, %s148
    %p162 = scmp.eq.s32.totalorder %s18, 7
    %p163 = por %p161, %p162
    %p165 = scmp.ne.s32.totalorder %s148, %s164
    %p166 = scmp.eq.s32.totalorder %s18, 0
    %p167 = por %p165, %p166
    %s168 = ssub.s32 %s19, %s31
    %s169 = ssub.s32 %s20, %s27
    %s170 = sor.u32 %s168, %s169
    %p171 = scmp.eq.s32.totalorder %s170, 0
    %s173 = sadd.s32 %s172, 1
    %s174 = scalar_select %p171, %s172, %s173
    %p177 = pneg %p171
    %p178 = scmp.eq.s32.totalorder %s12, 7
    %p179 = por %p177, %p178
    %p180 = scmp.ne.s32.totalorder %s172, %s175
    %p181 = scmp.eq.s32.totalorder %s12, 0
    %p182 = por %p180, %p181
    %p183 = scmp.ne.s32.totalorder %s172, %s175
    %p184 = scmp.eq.s32.totalorder %s17, 7
    %p185 = por %p183, %p184
    %p186 = scmp.ne.s32.totalorder %s175, %s176
    %p187 = scmp.eq.s32.totalorder %s17, 0
    %p188 = por %p186, %p187
    %p189 = scmp.ne.s32.totalorder %s175, %s176
    %p190 = scmp.eq.s32.totalorder %s18, 7
    %p191 = por %p189, %p190
    %p193 = scmp.ne.s32.totalorder %s176, %s192
    %p194 = scmp.eq.s32.totalorder %s18, 0
    %p195 = por %p193, %p194
    %s196 = ssub.s32 %s19, %s31
    %s197 = ssub.s32 %s20, %s27
    %s198 = sor.u32 %s196, %s197
    %p199 = scmp.eq.s32.totalorder %s198, 0
    %s201 = sadd.s32 %s200, 1
    %s202 = scalar_select %p199, %s200, %s201
    %p205 = pneg %p199
    %p206 = scmp.eq.s32.totalorder %s12, 7
    %p207 = por %p205, %p206
    %p208 = scmp.ne.s32.totalorder %s200, %s203
    %p209 = scmp.eq.s32.totalorder %s12, 0
    %p210 = por %p208, %p209
    %p211 = scmp.ne.s32.totalorder %s200, %s203
    %p212 = scmp.eq.s32.totalorder %s17, 7
    %p213 = por %p211, %p212
    %p214 = scmp.ne.s32.totalorder %s203, %s204
    %p215 = scmp.eq.s32.totalorder %s17, 0
    %p216 = por %p214, %p215
    %p217 = scmp.ne.s32.totalorder %s203, %s204
    %p218 = scmp.eq.s32.totalorder %s18, 7
    %p219 = por %p217, %p218
    %p221 = scmp.ne.s32.totalorder %s204, %s220
    %p222 = scmp.eq.s32.totalorder %s18, 0
    %p223 = por %p221, %p222
    %p224 = scmp.le.s32.totalorder 1, %s12
    %p225 = scmp.lt.s32.totalorder %s12, 9
    %p226 = pnand %p224, %p225
    %p227 = pneg %p226
    // Predicated region
    $region9: #{pure_mosa_forward.1} parent=5 // pred_check
      _
    $region10: #{pure_mosa_forward.1} parent=5 // pred_check_branch
      %229 = sbr.rel (%p226) target = $region12
    $region11: #{pure_mosa_forward.1} parent=5 // pred_region
      %s230 = ssub.s32 %s12, 1
    $region12: #{pure_mosa_forward.1} parent=5 // pred_fallthru
      _
    %p231 = scmp.lt.s32.totalorder %s12, 8
    // Predicated region
    $region13: #{pure_mosa_forward.1} parent=5 // pred_check
      %p232 = pneg %p231
    $region14: #{pure_mosa_forward.1} parent=5 // pred_check_branch
      %234 = sbr.rel (%p232) target = $region16
    $region15: #{pure_mosa_forward.1} parent=5 // pred_region
      // Predicated region
      $region17: #{pure_mosa_forward.1} parent=15 // pred_check
        %p235 = pneg %p46
      $region18: #{pure_mosa_forward.1} parent=15 // pred_check_branch
        %237 = sbr.rel (%p235) target = $region20
      $region19: #{pure_mosa_forward.1} parent=15 // pred_region
        %p238 = scmp.lt.s32.totalorder %s19, 3
        %s239 = scalar_select %p238, %s19, 3
        %p240 = scmp.lt.s32.totalorder %s20, 1
        %s241 = scalar_select %p240, %s20, 1
        %s242 = smul.addr %s239, 2
        %s243 = sadd.s32 %s241, %s242
        %s244 = smul.addr %s243, 4
        %s245 = scalar_lea.vmem %s0, %s244
      $region20: #{pure_mosa_forward.1} parent=15 // pred_fallthru
        _
      // Predicated region
      $region21: #{pure_mosa_forward.1} parent=15 // pred_check
        %p246 = pneg %p72
      $region22: #{pure_mosa_forward.1} parent=15 // pred_check_branch
        %248 = sbr.rel (%p246) target = $region24
      $region23: #{pure_mosa_forward.1} parent=15 // pred_region
        %p249 = scmp.lt.s32.totalorder %s19, 3
        %s250 = scalar_select %p249, %s19, 3
        %s251 = smul.addr %s250, 20
        %s252 = smul.addr %s251, 4
        %s253 = scalar_lea.vmem %s1, %s252
      $region24: #{pure_mosa_forward.1} parent=15 // pred_fallthru
        _
      // Predicated region
      $region25: #{pure_mosa_forward.1} parent=15 // pred_check
        %p254 = pneg %p98
      $region26: #{pure_mosa_forward.1} parent=15 // pred_check_branch
        %256 = sbr.rel (%p254) target = $region28
      $region27: #{pure_mosa_forward.1} parent=15 // pred_region
        %p257 = scmp.lt.s32.totalorder %s19, 3
        %s258 = scalar_select %p257, %s19, 3
        %s259 = smul.addr %s258, 2
        %s260 = smul.addr %s259, 4
        %s261 = scalar_lea.vmem %s2, %s260
      $region28: #{pure_mosa_forward.1} parent=15 // pred_fallthru
        _
      // Predicated region
      $region29: #{pure_mosa_forward.1} parent=15 // pred_check
        %p262 = pneg %p126
      $region30: #{pure_mosa_forward.1} parent=15 // pred_check_branch
        %264 = sbr.rel (%p262) target = $region32
      $region31: #{pure_mosa_forward.1} parent=15 // pred_region
        %s265 = smul.u32 2, %s20
        %p266 = scmp.lt.s32.totalorder %s19, 3
        %s267 = scalar_select %p266, %s19, 3
        %p268 = scmp.lt.s32.totalorder %s265, 3
        %s269 = scalar_select %p268, %s265, 3
        %s270 = smul.addr %s267, 4
        %s271 = sadd.s32 %s269, %s270
        %s272 = smul.addr %s271, 8
        %s273 = scalar_lea.vmem %s3, %s272
        %s274 = smul.u32 2, %s20
      $region32: #{pure_mosa_forward.1} parent=15 // pred_fallthru
        _
      // Predicated region
      $region33: #{pure_mosa_forward.1} parent=15 // pred_check
        %p275 = pneg %p154
      $region34: #{pure_mosa_forward.1} parent=15 // pred_check_branch
        %277 = sbr.rel (%p275) target = $region36
      $region35: #{pure_mosa_forward.1} parent=15 // pred_region
        %s278 = smul.u32 2, %s20
        %p279 = scmp.lt.s32.totalorder %s19, 3
        %s280 = scalar_select %p279, %s19, 3
        %p281 = scmp.lt.s32.totalorder %s278, 3
        %s282 = scalar_select %p281, %s278, 3
        %s283 = smul.addr %s280, 4
        %s284 = sadd.s32 %s282, %s283
        %s285 = smul.addr %s284, 8
        %s286 = scalar_lea.vmem %s4, %s285
        %s287 = smul.u32 2, %s20
      $region36: #{pure_mosa_forward.1} parent=15 // pred_fallthru
        _
      // Predicated region
      $region37: #{pure_mosa_forward.1} parent=15 // pred_check
        %p288 = pneg %p182
      $region38: #{pure_mosa_forward.1} parent=15 // pred_check_branch
        %290 = sbr.rel (%p288) target = $region40
      $region39: #{pure_mosa_forward.1} parent=15 // pred_region
        %p291 = scmp.lt.s32.totalorder %s19, 3
        %s292 = scalar_select %p291, %s19, 3
        %p293 = scmp.lt.s32.totalorder %s20, 1
        %s294 = scalar_select %p293, %s20, 1
        %s295 = smul.addr %s292, 2
        %s296 = sadd.s32 %s294, %s295
        %s297 = scalar_lea.vmem %s5, %s296
      $region40: #{pure_mosa_forward.1} parent=15 // pred_fallthru
        _
    $region16: #{pure_mosa_forward.1} parent=5 // pred_fallthru
      _
    %p298 = scmp.le.s32.totalorder 1, %s12
    %p299 = scmp.lt.s32.totalorder %s12, 9
    %p300 = pnand %p298, %p299
    %p301 = pneg %p300
    // Predicated region
    $region41: #{pure_mosa_forward.1} parent=5 // pred_check
      _
    $region42: #{pure_mosa_forward.1} parent=5 // pred_check_branch
      %303 = sbr.rel (%p300) target = $region44
    $region43: #{pure_mosa_forward.1} parent=5 // pred_region
      %s304 = ssub.s32 %s12, 1
      %p305 = scmp.lt.s32.totalorder %s21, 3
      %s306 = scalar_select %p305, %s21, 3
      %p307 = scmp.lt.s32.totalorder %s22, 1
      %s308 = scalar_select %p307, %s22, 1
      %s309 = smul.addr %s306, 2
      %s310 = sadd.s32 %s308, %s309
      %s311 = smul.addr %s310, 4
      %s312 = scalar_lea.vmem %s0, %s311
      %p313 = pneg %p52
      %p314 = pneg %p49
      %p315 = scmp.lt.s32.totalorder %s21, 3
      %s316 = scalar_select %p315, %s21, 3
      %s317 = smul.addr %s316, 20
      %s318 = smul.addr %s317, 4
      %s319 = scalar_lea.vmem %s1, %s318
      %p320 = pneg %p78
      %p321 = pneg %p75
      %p322 = scmp.lt.s32.totalorder %s21, 3
      %s323 = scalar_select %p322, %s21, 3
      %s324 = smul.addr %s323, 2
      %s325 = smul.addr %s324, 4
      %s326 = scalar_lea.vmem %s2, %s325
      %p327 = pneg %p104
      %p328 = pneg %p101
      %s329 = smul.u32 2, %s22
      %p330 = scmp.lt.s32.totalorder %s21, 3
      %s331 = scalar_select %p330, %s21, 3
      %p332 = scmp.lt.s32.totalorder %s329, 3
      %s333 = scalar_select %p332, %s329, 3
      %s334 = smul.addr %s331, 4
      %s335 = sadd.s32 %s333, %s334
      %s336 = smul.addr %s335, 8
      %s337 = scalar_lea.vmem %s3, %s336
      %p338 = pneg %p132
      %p339 = pneg %p129
      %s340 = smul.u32 2, %s22
      %p341 = scmp.lt.s32.totalorder %s21, 3
      %s342 = scalar_select %p341, %s21, 3
      %p343 = scmp.lt.s32.totalorder %s340, 3
      %s344 = scalar_select %p343, %s340, 3
      %s345 = smul.addr %s342, 4
      %s346 = sadd.s32 %s344, %s345
      %s347 = smul.addr %s346, 8
      %s348 = scalar_lea.vmem %s4, %s347
      %p349 = pneg %p160
      %p350 = pneg %p157
      %p351 = scmp.lt.s32.totalorder %s21, 3
      %s352 = scalar_select %p351, %s21, 3
      %p353 = scmp.lt.s32.totalorder %s22, 1
      %s354 = scalar_select %p353, %s22, 1
      %s355 = smul.addr %s352, 2
      %s356 = sadd.s32 %s354, %s355
      %s357 = scalar_lea.vmem %s5, %s356
      %p358 = pneg %p188
      %p359 = pneg %p185
      %p360 = pneg %p216
      %p361 = pneg %p213
      %p362 = scmp.lt.s32.totalorder %s21, 3
      %s363 = scalar_select %p362, %s21, 3
      %p364 = scmp.lt.s32.totalorder %s22, 1
      %s365 = scalar_select %p364, %s22, 1
      %s366 = smul.addr %s363, 2
      %s367 = sadd.s32 %s365, %s366
      %s368 = smul.addr %s367, 8
      %s369 = scalar_lea.vmem %s6, %s368
      %p370 = scmp.lt.s32.totalorder %s21, 3
      %s371 = scalar_select %p370, %s21, 3
      %p372 = scmp.lt.s32.totalorder %s22, 1
      %s373 = scalar_select %p372, %s22, 1
      %s374 = smul.addr %s371, 2
      %s375 = sadd.s32 %s373, %s374
      %s376 = smul.addr %s375, 4
      %s377 = scalar_lea.vmem %s0, %s376
      %p378 = scmp.lt.s32.totalorder %s21, 3
      %s379 = scalar_select %p378, %s21, 3
      %s380 = smul.addr %s379, 20
      %s381 = smul.addr %s380, 4
      %s382 = scalar_lea.vmem %s1, %s381
      %p383 = scmp.lt.s32.totalorder %s21, 3
      %s384 = scalar_select %p383, %s21, 3
      %s385 = smul.addr %s384, 2
      %s386 = smul.addr %s385, 4
      %s387 = scalar_lea.vmem %s2, %s386
      %s388 = smul.u32 2, %s22
      %p389 = scmp.lt.s32.totalorder %s21, 3
      %s390 = scalar_select %p389, %s21, 3
      %p391 = scmp.lt.s32.totalorder %s388, 3
      %s392 = scalar_select %p391, %s388, 3
      %s393 = smul.addr %s390, 4
      %s394 = sadd.s32 %s392, %s393
      %s395 = smul.addr %s394, 8
      %s396 = scalar_lea.vmem %s3, %s395
      %s397 = smul.u32 2, %s22
      %s398 = smul.u32 2, %s22
      %p399 = scmp.lt.s32.totalorder %s21, 3
      %s400 = scalar_select %p399, %s21, 3
      %p401 = scmp.lt.s32.totalorder %s398, 3
      %s402 = scalar_select %p401, %s398, 3
      %s403 = smul.addr %s400, 4
      %s404 = sadd.s32 %s402, %s403
      %s405 = smul.addr %s404, 8
      %s406 = scalar_lea.vmem %s4, %s405
      %s407 = smul.u32 2, %s22
      %p408 = scmp.lt.s32.totalorder %s21, 3
      %s409 = scalar_select %p408, %s21, 3
      %p410 = scmp.lt.s32.totalorder %s22, 1
      %s411 = scalar_select %p410, %s22, 1
      %s412 = smul.addr %s409, 2
      %s413 = sadd.s32 %s411, %s412
      %s414 = scalar_lea.vmem %s5, %s413
      %p415 = scmp.lt.s32.totalorder %s21, 3
      %s416 = scalar_select %p415, %s21, 3
      %p417 = scmp.lt.s32.totalorder %s22, 1
      %s418 = scalar_select %p417, %s22, 1
      %s419 = smul.addr %s416, 2
      %s420 = sadd.s32 %s418, %s419
      %s421 = smul.addr %s420, 8
      %s422 = scalar_lea.vmem %s6, %s421
      %v424 = vld [vmem:[%s377] sm:$0xf]
      %v425 = vld [vmem:[%s396] sm:$0xff]
      %s426 = scalar_lea.vmem %s396, 8
      %v427 = vld [vmem:[%s426] sm:$0xff]
      %v428 = vld [vmem:[%s406] sm:$0xff]
      %s429 = scalar_lea.vmem %s406, 8
      %v430 = vld [vmem:[%s429] sm:$0xff]
      %v431 = vld [vmem:[%s414] sm:$0x1]
      %v432 = vld [vmem:[%s382] sm:$0xf]
      %v433 = vld [vmem:[%s382 + $0x4] sm:$0xf]
      %v434 = vld [vmem:[%s382 + $0x8] sm:$0xf]
      %v435 = vld [vmem:[%s382 + $0xc] sm:$0xf]
      %s436 = scalar_lea.vmem %s382, 16
      %v437 = vld [vmem:[%s436] sm:$0xf]
      %v438 = vld [vmem:[%s436 + $0x4] sm:$0xf]
      %v439 = vld [vmem:[%s436 + $0x8] sm:$0xf]
      %v440 = vld [vmem:[%s436 + $0xc] sm:$0xf]
      %s441 = scalar_lea.vmem %s382, 32
      %v442 = vld [vmem:[%s441] sm:$0xf]
      %v443 = vld [vmem:[%s441 + $0x4] sm:$0xf]
      %v444 = vld [vmem:[%s441 + $0x8] sm:$0xf]
      %v445 = vld [vmem:[%s441 + $0xc] sm:$0xf]
      %s446 = scalar_lea.vmem %s382, 48
      %v447 = vld [vmem:[%s446] sm:$0xf]
      %v448 = vld [vmem:[%s446 + $0x4] sm:$0xf]
      %v449 = vld [vmem:[%s446 + $0x8] sm:$0xf]
      %v450 = vld [vmem:[%s446 + $0xc] sm:$0xf]
      %s451 = scalar_lea.vmem %s382, 64
      %v452 = vld [vmem:[%s451] sm:$0xf]
      %v453 = vld [vmem:[%s451 + $0x4] sm:$0xf]
      %v454 = vld [vmem:[%s451 + $0x8] sm:$0xf]
      %v455 = vld [vmem:[%s451 + $0xc] sm:$0xf]
      %v456 = vld [vmem:[%s387] sm:$0xf]
      %v457 = vld [vmem:[%s387 + $0x4] sm:$0xf]
      %v462 = vunpack.c.l.b16 %v432
      %v463 = vunpack.c.l.b16 %v433
      %v464 = vunpack.c.l.b16 %v434
      %v465 = vunpack.c.l.b16 %v435
      %v466 = vpack.c.b16 %v463, %v462
      %v467 = vpack.c.b16 %v465, %v464
      %vm470 = vcmask 261120
      %v472 = vsel %vm470, %v424, 0
      %474 = vmatprep.subr.bf16.mxu0 0
      %475 = vmatpush1.bf16.msra.mxu0 %v466
      %476 = vmatprep.subr.bf16.mxu0 0
      %477 = vmatpush1.bf16.msra.mxu0 %v467
      %478 = vmatprep.subr.bf16.mxu0 0
      %479 = vmatpush1.bf16.msra.mxu0 0
      %480 = vmatprep.subr.bf16.mxu0 0
      %481 = vmatpush1.bf16.msra.mxu0 0
      %482 = vmatprep.subr.bf16.mxu0 0
      %483 = vmatpush1.bf16.msra.mxu0 0
      %484 = vmatprep.subr.bf16.mxu0 0
      %485 = vmatpush1.bf16.msra.mxu0 0
      %486 = vmatprep.subr.bf16.mxu0 0
      %487 = vmatpush1.bf16.msra.mxu0 0
      %488 = vmatprep.subr.bf16.mxu0 0
      %489 = vmatpush1.bf16.msra.mxu0 0
      %490 = vmatprep.subr.bf16.mxu0 0
      %491 = vmatpush1.bf16.msra.mxu0 0
      %492 = vmatprep.subr.bf16.mxu0 0
      %493 = vmatpush1.bf16.msra.mxu0 0
      %494 = vmatprep.subr.bf16.mxu0 0
      %495 = vmatpush1.bf16.msra.mxu0 0
      %496 = vmatprep.subr.bf16.mxu0 0
      %497 = vmatpush1.bf16.msra.mxu0 0
      %498 = vmatprep.subr.bf16.mxu0 0
      %499 = vmatpush1.bf16.msra.mxu0 0
      %500 = vmatprep.subr.bf16.mxu0 0
      %501 = vmatpush1.bf16.msra.mxu0 0
      %502 = vmatprep.subr.bf16.mxu0 0
      %503 = vmatpush1.bf16.msra.mxu0 0
      %504 = vmatprep.subr.bf16.mxu0 0
      %505 = vmatpush1.bf16.msra.mxu0 0
      %506 = vmatprep.mubr.bf16.mxu0 0
      %507 = vmatmul.mubr.bf16.gmra.mrb[0].mxu0 %v472
      %v508 = vpop.f32.mrb[0].mxu0
      %v509 = vadd.f32 0.0, %v508
      %v510 = vpop.f32.mrb[0].mxu0
      %v511 = vpop.f32.mrb[0].mxu0
      %v512 = vpop.f32.mrb[0].mxu0
      %513 = vdwg.mxu0
      %v518 = vunpack.c.l.b16 %v437
      %v519 = vunpack.c.l.b16 %v438
      %v520 = vunpack.c.l.b16 %v439
      %v521 = vunpack.c.l.b16 %v440
      %v522 = vpack.c.b16 %v519, %v518
      %v523 = vpack.c.b16 %v521, %v520
      %526 = vmatprep.subr.bf16.mxu0 0
      %527 = vmatpush1.bf16.msra.mxu0 %v522
      %528 = vmatprep.subr.bf16.mxu0 0
      %529 = vmatpush1.bf16.msra.mxu0 %v523
      %530 = vmatprep.subr.bf16.mxu0 0
      %531 = vmatpush1.bf16.msra.mxu0 0
      %532 = vmatprep.subr.bf16.mxu0 0
      %533 = vmatpush1.bf16.msra.mxu0 0
      %534 = vmatprep.subr.bf16.mxu0 0
      %535 = vmatpush1.bf16.msra.mxu0 0
      %536 = vmatprep.subr.bf16.mxu0 0
      %537 = vmatpush1.bf16.msra.mxu0 0
      %538 = vmatprep.subr.bf16.mxu0 0
      %539 = vmatpush1.bf16.msra.mxu0 0
      %540 = vmatprep.subr.bf16.mxu0 0
      %541 = vmatpush1.bf16.msra.mxu0 0
      %542 = vmatprep.subr.bf16.mxu0 0
      %543 = vmatpush1.bf16.msra.mxu0 0
      %544 = vmatprep.subr.bf16.mxu0 0
      %545 = vmatpush1.bf16.msra.mxu0 0
      %546 = vmatprep.subr.bf16.mxu0 0
      %547 = vmatpush1.bf16.msra.mxu0 0
      %548 = vmatprep.subr.bf16.mxu0 0
      %549 = vmatpush1.bf16.msra.mxu0 0
      %550 = vmatprep.subr.bf16.mxu0 0
      %551 = vmatpush1.bf16.msra.mxu0 0
      %552 = vmatprep.subr.bf16.mxu0 0
      %553 = vmatpush1.bf16.msra.mxu0 0
      %554 = vmatprep.subr.bf16.mxu0 0
      %555 = vmatpush1.bf16.msra.mxu0 0
      %556 = vmatprep.subr.bf16.mxu0 0
      %557 = vmatpush1.bf16.msra.mxu0 0
      %558 = vmatprep.mubr.bf16.mxu0 0
      %559 = vmatmul.mubr.bf16.gmra.mrb[0].mxu0 %v472
      %v560 = vpop.f32.mrb[0].mxu0
      %v561 = vadd.f32 0.0, %v560
      %v562 = vpop.f32.mrb[0].mxu0
      %v563 = vpop.f32.mrb[0].mxu0
      %v564 = vpop.f32.mrb[0].mxu0
      %565 = vdwg.mxu0
      %v570 = vunpack.c.l.b16 %v442
      %v571 = vunpack.c.l.b16 %v443
      %v572 = vunpack.c.l.b16 %v444
      %v573 = vunpack.c.l.b16 %v445
      %v574 = vpack.c.b16 %v571, %v570
      %v575 = vpack.c.b16 %v573, %v572
      %578 = vmatprep.subr.bf16.mxu0 0
      %579 = vmatpush1.bf16.msra.mxu0 %v574
      %580 = vmatprep.subr.bf16.mxu0 0
      %581 = vmatpush1.bf16.msra.mxu0 %v575
      %582 = vmatprep.subr.bf16.mxu0 0
      %583 = vmatpush1.bf16.msra.mxu0 0
      %584 = vmatprep.subr.bf16.mxu0 0
      %585 = vmatpush1.bf16.msra.mxu0 0
      %586 = vmatprep.subr.bf16.mxu0 0
      %587 = vmatpush1.bf16.msra.mxu0 0
      %588 = vmatprep.subr.bf16.mxu0 0
      %589 = vmatpush1.bf16.msra.mxu0 0
      %590 = vmatprep.subr.bf16.mxu0 0
      %591 = vmatpush1.bf16.msra.mxu0 0
      %592 = vmatprep.subr.bf16.mxu0 0
      %593 = vmatpush1.bf16.msra.mxu0 0
      %594 = vmatprep.subr.bf16.mxu0 0
      %595 = vmatpush1.bf16.msra.mxu0 0
      %596 = vmatprep.subr.bf16.mxu0 0
      %597 = vmatpush1.bf16.msra.mxu0 0
      %598 = vmatprep.subr.bf16.mxu0 0
      %599 = vmatpush1.bf16.msra.mxu0 0
      %600 = vmatprep.subr.bf16.mxu0 0
      %601 = vmatpush1.bf16.msra.mxu0 0
      %602 = vmatprep.subr.bf16.mxu0 0
      %603 = vmatpush1.bf16.msra.mxu0 0
      %604 = vmatprep.subr.bf16.mxu0 0
      %605 = vmatpush1.bf16.msra.mxu0 0
      %606 = vmatprep.subr.bf16.mxu0 0
      %607 = vmatpush1.bf16.msra.mxu0 0
      %608 = vmatprep.subr.bf16.mxu0 0
      %609 = vmatpush1.bf16.msra.mxu0 0
      %610 = vmatprep.mubr.bf16.mxu0 0
      %611 = vmatmul.mubr.bf16.gmra.mrb[0].mxu0 %v472
      %v612 = vpop.f32.mrb[0].mxu0
      %v613 = vadd.f32 0.0, %v612
      %v614 = vpop.f32.mrb[0].mxu0
      %v615 = vpop.f32.mrb[0].mxu0
      %v616 = vpop.f32.mrb[0].mxu0
      %617 = vdwg.mxu0
      %v622 = vunpack.c.l.b16 %v447
      %v623 = vunpack.c.l.b16 %v448
      %v624 = vunpack.c.l.b16 %v449
      %v625 = vunpack.c.l.b16 %v450
      %v626 = vpack.c.b16 %v623, %v622
      %v627 = vpack.c.b16 %v625, %v624
      %630 = vmatprep.subr.bf16.mxu0 0
      %631 = vmatpush1.bf16.msra.mxu0 %v626
      %632 = vmatprep.subr.bf16.mxu0 0
      %633 = vmatpush1.bf16.msra.mxu0 %v627
      %634 = vmatprep.subr.bf16.mxu0 0
      %635 = vmatpush1.bf16.msra.mxu0 0
      %636 = vmatprep.subr.bf16.mxu0 0
      %637 = vmatpush1.bf16.msra.mxu0 0
      %638 = vmatprep.subr.bf16.mxu0 0
      %639 = vmatpush1.bf16.msra.mxu0 0
      %640 = vmatprep.subr.bf16.mxu0 0
      %641 = vmatpush1.bf16.msra.mxu0 0
      %642 = vmatprep.subr.bf16.mxu0 0
      %643 = vmatpush1.bf16.msra.mxu0 0
      %644 = vmatprep.subr.bf16.mxu0 0
      %645 = vmatpush1.bf16.msra.mxu0 0
      %646 = vmatprep.subr.bf16.mxu0 0
      %647 = vmatpush1.bf16.msra.mxu0 0
      %648 = vmatprep.subr.bf16.mxu0 0
      %649 = vmatpush1.bf16.msra.mxu0 0
      %650 = vmatprep.subr.bf16.mxu0 0
      %651 = vmatpush1.bf16.msra.mxu0 0
      %652 = vmatprep.subr.bf16.mxu0 0
      %653 = vmatpush1.bf16.msra.mxu0 0
      %654 = vmatprep.subr.bf16.mxu0 0
      %655 = vmatpush1.bf16.msra.mxu0 0
      %656 = vmatprep.subr.bf16.mxu0 0
      %657 = vmatpush1.bf16.msra.mxu0 0
      %658 = vmatprep.subr.bf16.mxu0 0
      %659 = vmatpush1.bf16.msra.mxu0 0
      %660 = vmatprep.subr.bf16.mxu0 0
      %661 = vmatpush1.bf16.msra.mxu0 0
      %662 = vmatprep.mubr.bf16.mxu0 0
      %663 = vmatmul.mubr.bf16.gmra.mrb[0].mxu0 %v472
      %v664 = vpop.f32.mrb[0].mxu0
      %v665 = vadd.f32 0.0, %v664
      %v666 = vpop.f32.mrb[0].mxu0
      %v667 = vpop.f32.mrb[0].mxu0
      %v668 = vpop.f32.mrb[0].mxu0
      %669 = vdwg.mxu0
      %v674 = vunpack.c.l.b16 %v452
      %v675 = vunpack.c.l.b16 %v453
      %v676 = vunpack.c.l.b16 %v454
      %v677 = vunpack.c.l.b16 %v455
      %v678 = vpack.c.b16 %v675, %v674
      %v679 = vpack.c.b16 %v677, %v676
      %682 = vmatprep.subr.bf16.mxu0 0
      %683 = vmatpush1.bf16.msra.mxu0 %v678
      %684 = vmatprep.subr.bf16.mxu0 0
      %685 = vmatpush1.bf16.msra.mxu0 %v679
      %686 = vmatprep.subr.bf16.mxu0 0
      %687 = vmatpush1.bf16.msra.mxu0 0
      %688 = vmatprep.subr.bf16.mxu0 0
      %689 = vmatpush1.bf16.msra.mxu0 0
      %690 = vmatprep.subr.bf16.mxu0 0
      %691 = vmatpush1.bf16.msra.mxu0 0
      %692 = vmatprep.subr.bf16.mxu0 0
      %693 = vmatpush1.bf16.msra.mxu0 0
      %694 = vmatprep.subr.bf16.mxu0 0
      %695 = vmatpush1.bf16.msra.mxu0 0
      %696 = vmatprep.subr.bf16.mxu0 0
      %697 = vmatpush1.bf16.msra.mxu0 0
      %698 = vmatprep.subr.bf16.mxu0 0
      %699 = vmatpush1.bf16.msra.mxu0 0
      %700 = vmatprep.subr.bf16.mxu0 0
      %701 = vmatpush1.bf16.msra.mxu0 0
      %702 = vmatprep.subr.bf16.mxu0 0
      %703 = vmatpush1.bf16.msra.mxu0 0
      %704 = vmatprep.subr.bf16.mxu0 0
      %705 = vmatpush1.bf16.msra.mxu0 0
      %706 = vmatprep.subr.bf16.mxu0 0
      %707 = vmatpush1.bf16.msra.mxu0 0
      %708 = vmatprep.subr.bf16.mxu0 0
      %709 = vmatpush1.bf16.msra.mxu0 0
      %710 = vmatprep.subr.bf16.mxu0 0
      %711 = vmatpush1.bf16.msra.mxu0 0
      %712 = vmatprep.subr.bf16.mxu0 0
      %713 = vmatpush1.bf16.msra.mxu0 0
      %714 = vmatprep.mubr.bf16.mxu0 0
      %715 = vmatmul.mubr.bf16.gmra.mrb[0].mxu0 %v472
      %v716 = vpop.f32.mrb[0].mxu0
      %v717 = vadd.f32 0.0, %v716
      %v718 = vpop.f32.mrb[0].mxu0
      %v719 = vpop.f32.mrb[0].mxu0
      %v720 = vpop.f32.mrb[0].mxu0
      %721 = vdwg.mxu0
      %v722 = vmul.f32 %v509, %v425
      %v723 = vmul.f32 %v561, %v427
      %v724 = vadd.f32 %v722, %v723
      %v725 = vmul.f32 %v613, %v425
      %v726 = vmul.f32 %v665, %v427
      %v727 = vadd.f32 %v725, %v726
      %729 = vset.pattern.permute.xlu0 0
      %730 = vperm.xlu0 %729, %v430
      %v731 = vpop.permute.xlu0 %730
      %v734 = vlaneseq
      %v735 = vshrl.u32 %v734, 7
      %v736 = vsub.s32 0, %v735
      %v737 = vrot.slane %v431, %v736
      %vm739 = vcmp.ge.f32.partialorder %v731, %v737
      %v740 = vpack.c.bf16 %v724, %v724
      %v741 = vpack.c.bf16 %v727, %v727
      %vm742 = vcmask 130048
      %v744 = vsel %vm742, %v740, 0
      %v747 = vsel %vm742, %v741, 0
      %749 = vmatprep.subr.bf16.mxu0 0
      %750 = vmatpush1.bf16.xpose.msra.mxu0 %v747
      %751 = vmatprep.subr.bf16.mxu0 0
      %752 = vmatpush1.bf16.xpose.msra.mxu0 0
      %753 = vmatprep.subr.bf16.mxu0 0
      %754 = vmatpush1.bf16.xpose.msra.mxu0 0
      %755 = vmatprep.subr.bf16.mxu0 0
      %756 = vmatpush1.bf16.xpose.msra.mxu0 0
      %757 = vmatprep.subr.bf16.mxu0 0
      %758 = vmatpush1.bf16.xpose.msra.mxu0 0
      %759 = vmatprep.subr.bf16.mxu0 0
      %760 = vmatpush1.bf16.xpose.msra.mxu0 0
      %761 = vmatprep.subr.bf16.mxu0 0
      %762 = vmatpush1.bf16.xpose.msra.mxu0 0
      %763 = vmatprep.subr.bf16.mxu0 0
      %764 = vmatpush1.bf16.xpose.msra.mxu0 0
      %765 = vmatprep.subr.bf16.mxu0 0
      %766 = vmatpush1.bf16.xpose.msra.mxu0 0
      %767 = vmatprep.subr.bf16.mxu0 0
      %768 = vmatpush1.bf16.xpose.msra.mxu0 0
      %769 = vmatprep.subr.bf16.mxu0 0
      %770 = vmatpush1.bf16.xpose.msra.mxu0 0
      %771 = vmatprep.subr.bf16.mxu0 0
      %772 = vmatpush1.bf16.xpose.msra.mxu0 0
      %773 = vmatprep.subr.bf16.mxu0 0
      %774 = vmatpush1.bf16.xpose.msra.mxu0 0
      %775 = vmatprep.subr.bf16.mxu0 0
      %776 = vmatpush1.bf16.xpose.msra.mxu0 0
      %777 = vmatprep.subr.bf16.mxu0 0
      %778 = vmatpush1.bf16.xpose.msra.mxu0 0
      %779 = vmatprep.subr.bf16.mxu0 0
      %780 = vmatpush1.bf16.xpose.msra.mxu0 0
      %781 = vmatprep.mubr.bf16.mxu0 0
      %782 = vmatmul.mubr.bf16.gmra.mrb[0].mxu0 %v744
      %v783 = vpop.f32.mrb[0].mxu0
      %v784 = vadd.f32 0.0, %v783
      %v785 = vpop.f32.mrb[0].mxu0
      %v786 = vpop.f32.mrb[0].mxu0
      %v787 = vpop.f32.mrb[0].mxu0
      %788 = vdwg.mxu0
      %v789 = vsel %vm739, %v784, -1e+30
      %vm790 = vcmask 64512
      %v791 = vsel %vm790, %v789, -inf
      %792 = vmax.xlane.f32.xlu0 %v791
      %v793 = vpop.xlane.xlu0 %792
      %v794 = vsub.f32 %v789, %v793
      %v795 = vmul.f32 %v794, 1.442695
      %v796 = vpow.pop %v795
      %v797 = vsel %vm790, %v796, 0.0
      %798 = vadd.xlane.f32.xlu0 %v797
      %v799 = vpop.xlane.xlu0 %798
      %v800 = vrcp.pop %v799
      %v801 = vmul.f32 %v428, %v800
      %v802 = vpack.c.bf16 %v796, %v796
      %v803 = vpack.c.bf16 %v717, %v717
      %v805 = vsel %vm790, %v802, 0
      %vm807 = vcmask 1043456
      %v809 = vsel %vm807, %v803, 0
      %811 = vmatprep.subr.bf16.mxu0 0
      %812 = vmatpush1.bf16.msra.mxu0 %v809
      %813 = vmatprep.subr.bf16.mxu0 0
      %814 = vmatpush1.bf16.msra.mxu0 0
      %815 = vmatprep.subr.bf16.mxu0 0
      %816 = vmatpush1.bf16.msra.mxu0 0
      %817 = vmatprep.subr.bf16.mxu0 0
      %818 = vmatpush1.bf16.msra.mxu0 0
      %819 = vmatprep.subr.bf16.mxu0 0
      %820 = vmatpush1.bf16.msra.mxu0 0
      %821 = vmatprep.subr.bf16.mxu0 0
      %822 = vmatpush1.bf16.msra.mxu0 0
      %823 = vmatprep.subr.bf16.mxu0 0
      %824 = vmatpush1.bf16.msra.mxu0 0
      %825 = vmatprep.subr.bf16.mxu0 0
      %826 = vmatpush1.bf16.msra.mxu0 0
      %827 = vmatprep.subr.bf16.mxu0 0
      %828 = vmatpush1.bf16.msra.mxu0 0
      %829 = vmatprep.subr.bf16.mxu0 0
      %830 = vmatpush1.bf16.msra.mxu0 0
      %831 = vmatprep.subr.bf16.mxu0 0
      %832 = vmatpush1.bf16.msra.mxu0 0
      %833 = vmatprep.subr.bf16.mxu0 0
      %834 = vmatpush1.bf16.msra.mxu0 0
      %835 = vmatprep.subr.bf16.mxu0 0
      %836 = vmatpush1.bf16.msra.mxu0 0
      %837 = vmatprep.subr.bf16.mxu0 0
      %838 = vmatpush1.bf16.msra.mxu0 0
      %839 = vmatprep.subr.bf16.mxu0 0
      %840 = vmatpush1.bf16.msra.mxu0 0
      %841 = vmatprep.subr.bf16.mxu0 0
      %842 = vmatpush1.bf16.msra.mxu0 0
      %843 = vmatprep.mubr.bf16.mxu0 0
      %844 = vmatmul.mubr.bf16.gmra.mrb[0].mxu0 %v805
      %v845 = vpop.f32.mrb[0].mxu0
      %v846 = vadd.f32 0.0, %v845
      %v847 = vpop.f32.mrb[0].mxu0
      %v848 = vpop.f32.mrb[0].mxu0
      %v849 = vpop.f32.mrb[0].mxu0
      %850 = vdwg.mxu0
      %852 = vset.pattern.permute.xlu0 0
      %853 = vperm.xlu0 %852, %v801
      %v854 = vpop.permute.xlu0 %853
      %v856 = vmul.f32 %v846, %v854
      %v857 = vpack.c.bf16 %v856, %v856
      %v860 = vunpack.c.l.b16 %v456
      %v861 = vunpack.c.l.b16 %v457
      %v862 = vpack.c.b16 %v861, %v860
      %v865 = vsel %vm742, %v857, 0
      %867 = vmatprep.subr.bf16.mxu0 0
      %868 = vmatpush1.bf16.msra.mxu0 %v862
      %869 = vmatprep.subr.bf16.mxu0 0
      %870 = vmatpush1.bf16.msra.mxu0 0
      %871 = vmatprep.subr.bf16.mxu0 0
      %872 = vmatpush1.bf16.msra.mxu0 0
      %873 = vmatprep.subr.bf16.mxu0 0
      %874 = vmatpush1.bf16.msra.mxu0 0
      %875 = vmatprep.subr.bf16.mxu0 0
      %876 = vmatpush1.bf16.msra.mxu0 0
      %877 = vmatprep.subr.bf16.mxu0 0
      %878 = vmatpush1.bf16.msra.mxu0 0
      %879 = vmatprep.subr.bf16.mxu0 0
      %880 = vmatpush1.bf16.msra.mxu0 0
      %881 = vmatprep.subr.bf16.mxu0 0
      %882 = vmatpush1.bf16.msra.mxu0 0
      %883 = vmatprep.subr.bf16.mxu0 0
      %884 = vmatpush1.bf16.msra.mxu0 0
      %885 = vmatprep.subr.bf16.mxu0 0
      %886 = vmatpush1.bf16.msra.mxu0 0
      %887 = vmatprep.subr.bf16.mxu0 0
      %888 = vmatpush1.bf16.msra.mxu0 0
      %889 = vmatprep.subr.bf16.mxu0 0
      %890 = vmatpush1.bf16.msra.mxu0 0
      %891 = vmatprep.subr.bf16.mxu0 0
      %892 = vmatpush1.bf16.msra.mxu0 0
      %893 = vmatprep.subr.bf16.mxu0 0
      %894 = vmatpush1.bf16.msra.mxu0 0
      %895 = vmatprep.subr.bf16.mxu0 0
      %896 = vmatpush1.bf16.msra.mxu0 0
      %897 = vmatprep.subr.bf16.mxu0 0
      %898 = vmatpush1.bf16.msra.mxu0 0
      %899 = vmatprep.mubr.bf16.mxu0 0
      %900 = vmatmul.mubr.bf16.gmra.mrb[0].mxu0 %v865
      %v901 = vpop.f32.mrb[0].mxu0
      %v902 = vadd.f32 0.0, %v901
      %v903 = vpop.f32.mrb[0].mxu0
      %v904 = vpop.f32.mrb[0].mxu0
      %v905 = vpop.f32.mrb[0].mxu0
      %906 = vdwg.mxu0
      %907 = vst.msk [vmem:[%s422] sm:$0xff] %vm470, %v902
      %p908 = scmp.lt.s32.totalorder %s21, 3
      %s909 = scalar_select %p908, %s21, 3
      %p910 = scmp.lt.s32.totalorder %s22, 1
      %s911 = scalar_select %p910, %s22, 1
      %s912 = smul.addr %s909, 2
      %s913 = sadd.s32 %s911, %s912
      %s914 = smul.addr %s913, 8
      %s915 = scalar_lea.vmem %s6, %s914
      // Predicated region
      $region45: #{pure_mosa_forward.1} parent=43 // pred_check
        %p916 = pneg %p213
      $region46: #{pure_mosa_forward.1} parent=43 // pred_check_branch
        %918 = sbr.rel (%p916) target = $region48
      $region47: #{pure_mosa_forward.1} parent=43 // pred_region
        _
      $region48: #{pure_mosa_forward.1} parent=43 // pred_fallthru
        _
    $region44: #{pure_mosa_forward.1} parent=5 // pred_fallthru
      _
    %p919 = scmp.le.s32.totalorder 2, %s12
    // Predicated region
    $region49: #{pure_mosa_forward.1} parent=5 // pred_check
      %p920 = pneg %p919
    $region50: #{pure_mosa_forward.1} parent=5 // pred_check_branch
      %922 = sbr.rel (%p920) target = $region52
    $region51: #{pure_mosa_forward.1} parent=5 // pred_region
      %s923 = ssub.s32 %s12, 2
      // Predicated region
      $region53: #{pure_mosa_forward.1} parent=51 // pred_check
        %p924 = pneg %p219
      $region54: #{pure_mosa_forward.1} parent=51 // pred_check_branch
        %926 = sbr.rel (%p924) target = $region56
      $region55: #{pure_mosa_forward.1} parent=51 // pred_region
        %p927 = scmp.lt.s32.totalorder %s23, 3
        %s928 = scalar_select %p927, %s23, 3
        %p929 = scmp.lt.s32.totalorder %s24, 1
        %s930 = scalar_select %p929, %s24, 1
        %s931 = smul.addr %s928, 2
        %s932 = sadd.s32 %s930, %s931
        %s933 = smul.addr %s932, 8
        %s934 = scalar_lea.vmem %s6, %s933
      $region56: #{pure_mosa_forward.1} parent=51 // pred_fallthru
        _
    $region52: #{pure_mosa_forward.1} parent=5 // pred_fallthru
      _
  $region6: #{pure_mosa_forward.1} parent=0 // loop_footer
    %s16 = sadd.s32 1, %s12
  $region7: #{pure_mosa_forward.1} parent=0 // loop_footer_branch
    %11 = sbr.rel target = $region3
  $region8: #{pure_mosa_forward.1} parent=0 // loop_exit
    _

</llo_original>
